<compile_context>
chip_gen: v7x
topology: tpu7x:2x2x1
jax: 0.10.0
libtpu: 0.0.40
codegen_flags: <defaults>
</compile_context>

<pallas_src>
import functools

import jax
import jax.numpy as jnp
from jax.experimental import pallas as pl
from jax.experimental.pallas import tpu as pltpu

_MIB = 1024 * 1024


def _chip_defaults():
    """(target_tile_bytes_per_buffer, vmem_limit_bytes, low_precision_scale_ok)."""
    kind = ""
    try:
        kind = jax.devices()[0].device_kind.lower()
    except Exception:  # pragma: no cover - defensive; fall back to safe defaults
        pass
    is_v5 = "v5" in kind
    is_v6 = "v6" in kind
    if is_v6:
        # 128 MiB physical VMEM: large tiles, generous scoped limit.
        return 8 * _MIB, 96 * _MIB, True
    if is_v5:
        # v5e: 128 MiB physical but 16 MiB default scoped limit; no bf16 VALU.
        return 4 * _MIB, 64 * _MIB, False
    # v7x (64 MiB physical VMEM) and unknown chips: conservative budget.
    return 3 * _MIB, 48 * _MIB, True


def _rmsnorm_kernel(x_ref, w_ref, o_ref, *, eps, scale_in_io_dtype):
    # x tile: (tr, dim); w tile: (1, dim), already in the compute/scale dtype.
    x = x_ref[...]
    xf = x.astype(jnp.float32)
    ms = jnp.mean(xf * xf, axis=-1, keepdims=True)   # (tr, 1) f32 reduction
    inv = jax.lax.rsqrt(ms + eps)                    # EUP rsqrt, f32
    if scale_in_io_dtype:
        # inv cast is only (tr, 1); both tr x dim multiplies run in bf16.
        o_ref[...] = (x * inv.astype(x.dtype)) * w_ref[...]
    else:
        # w_ref is already f32 (cast hoisted to the wrapper).
        o_ref[...] = (xf * inv * w_ref[...]).astype(o_ref.dtype)


def _round_up(v, m):
    return ((v + m - 1) // m) * m


def pallas_rms_norm(x, weight, eps: float = 1e-6):
    """RMSNorm over the last axis; same shape/dtype as the input."""
    dim = x.shape[-1]
    lead = x.shape[:-1]
    rows = 1
    for d in lead:
        rows *= d

    target_tile_bytes, vmem_limit_bytes, low_precision_ok = _chip_defaults()

    io_itemsize = jnp.dtype(x.dtype).itemsize
    scale_in_io_dtype = bool(
        low_precision_ok
        and jnp.issubdtype(x.dtype, jnp.floating)
        and io_itemsize < 4
    )
    scale_dtype = x.dtype if scale_in_io_dtype else jnp.float32

    x2 = x.reshape(rows, dim)
    w2 = weight.reshape(1, dim).astype(scale_dtype)   # cast hoisted out of kernel

    # --- row tile selection -------------------------------------------------
    row_bytes = dim * io_itemsize
    tr_budget = max(8, (target_tile_bytes // max(row_bytes, 1)) // 8 * 8)

    if rows <= tr_budget:
        if rows > 8:
            # Split into >=2 tiles so ("parallel",) feeds both v7x TensorCores.
            tr = _round_up(pl.cdiv(rows, 2), 8)
        else:
            tr = rows  # full extent -> legal even if < 8
    else:
        tr = tr_budget

    grid = (pl.cdiv(rows, tr),)   # ragged last tile: reads padded, writes masked

    cost = pl.CostEstimate(
        flops=int(5 * rows * dim),
        transcendentals=int(rows),
        bytes_accessed=int(
            2 * rows * dim * io_itemsize + dim * jnp.dtype(w2.dtype).itemsize
        ),
    )

    y = pl.pallas_call(
        functools.partial(
            _rmsnorm_kernel, eps=float(eps), scale_in_io_dtype=scale_in_io_dtype
        ),
        out_shape=jax.ShapeDtypeStruct((rows, dim), x.dtype),
        grid_spec=pltpu.PrefetchScalarGridSpec(
            num_scalar_prefetch=0,
            grid=grid,
            in_specs=[
                pl.BlockSpec((tr, dim), lambda i: (i, 0)),   # activation row tile
                pl.BlockSpec((1, dim), lambda i: (0, 0)),    # weight: resident
            ],
            out_specs=pl.BlockSpec((tr, dim), lambda i: (i, 0)),
        ),
        compiler_params=pltpu.CompilerParams(
            dimension_semantics=("parallel",),     # shard row tiles across TCs
            vmem_limit_bytes=int(vmem_limit_bytes),
        ),
        cost_estimate=cost,
    )(x2, w2)

    return y.reshape(*lead, dim)


class RMSNormPallas:
    """Mirror of the PyTorch `RMSNorm` module (forward only)."""

    def __init__(self, dim: int, eps: float = 1e-6):
        self.dim = dim
        self.eps = eps
        self.weight = jnp.ones((dim,), dtype=jnp.float32)

    def __call__(self, x):
        return pallas_rms_norm(x, self.weight, self.eps)


if __name__ == "__main__":
    key = jax.random.PRNGKey(0)
    kx, kw = jax.random.split(key)

    batch, seq, hidden = 2, 8, 32
    layer = RMSNormPallas(hidden, eps=1e-6)
    # non-trivial scale so the weight path is exercised (module default is ones)
    layer.weight = 1.0 + 0.1 * jax.random.normal(kw, (hidden,), jnp.float32)

    x = jax.random.normal(kx, (batch, seq, hidden), jnp.float32).astype(jnp.bfloat16)

    y = layer(x)
    y = jax.block_until_ready(y)

    # plain-JAX reference (f32 compute, cast back like F.rms_norm on half inputs)
    xf = x.astype(jnp.float32)
    inv = jax.lax.rsqrt(jnp.mean(xf * xf, axis=-1, keepdims=True) + layer.eps)
    ref = (xf * inv * layer.weight.astype(jnp.float32)).astype(x.dtype).astype(jnp.float32)

    err = jnp.max(jnp.abs(y.astype(jnp.float32) - ref))
    assert y.shape == x.shape, y.shape
    assert y.dtype == x.dtype, y.dtype
    # bf16 I/O (and optional bf16 scaling on v6e/v7x) -> allow a few bf16 ulps.
    assert float(err) < 5e-2, float(err)

    print("KERNEL_OK")
</pallas_src>

<mosaic_0001>
module attributes {stable_mosaic.version = 11 : i64} {
  func.func @_rmsnorm_kernel(%arg0: i32, %arg1: memref<8x32xbf16, #tpu.memory_space<vmem>>, %arg2: memref<1x32xbf16, #tpu.memory_space<vmem>>, %arg3: memref<8x32xbf16, #tpu.memory_space<vmem>>) attributes {dimension_semantics = [#tpu.dimension_semantics<parallel>], iteration_bounds = array<i64: 2>, scalar_prefetch = 0 : i64, scratch_operands = 0 : i64, tpu.core_type = #tpu.core_type<tc>, window_params = [{transform_indices = @transform_0, window_bounds = array<i64: 8, 32>}, {pipeline_mode = #tpu.pipeline_mode<synchronous>, transform_indices = @transform_1, window_bounds = array<i64: 1, 32>}, {transform_indices = @transform_2, window_bounds = array<i64: 8, 32>}]} {
    %c0 = arith.constant 0 : index
    %c0_0 = arith.constant 0 : index
    %0 = vector.load %arg1[%c0, %c0_0] : memref<8x32xbf16, #tpu.memory_space<vmem>>, vector<8x32xbf16>
    %1 = arith.extf %0 : vector<8x32xbf16> to vector<8x32xf32>
    %2 = arith.mulf %1, %1 : vector<8x32xf32>
    %cst = arith.constant dense<0.000000e+00> : vector<8xf32>
    %3 = vector.multi_reduction <add>, %2, %cst [1] : vector<8x32xf32> to vector<8xf32>
    %4 = vector.shape_cast %3 : vector<8xf32> to vector<8x1xf32>
    %cst_1 = arith.constant 3.200000e+01 : f32
    %5 = vector.broadcast %cst_1 : f32 to vector<8x1xf32>
    %6 = arith.divf %4, %5 : vector<8x1xf32>
    %cst_2 = arith.constant 9.99999997E-7 : f32
    %7 = vector.broadcast %cst_2 : f32 to vector<8x1xf32>
    %8 = arith.addf %6, %7 : vector<8x1xf32>
    %9 = math.rsqrt %8 : vector<8x1xf32>
    %10 = arith.truncf %9 : vector<8x1xf32> to vector<8x1xbf16>
    %11 = vector.broadcast %10 : vector<8x1xbf16> to vector<8x32xbf16>
    %12 = arith.mulf %0, %11 : vector<8x32xbf16>
    %c0_3 = arith.constant 0 : index
    %c0_4 = arith.constant 0 : index
    %13 = vector.load %arg2[%c0_3, %c0_4] : memref<1x32xbf16, #tpu.memory_space<vmem>>, vector<1x32xbf16>
    %14 = vector.broadcast %13 : vector<1x32xbf16> to vector<8x32xbf16>
    %15 = arith.mulf %12, %14 : vector<8x32xbf16>
    %c0_5 = arith.constant 0 : index
    %c0_6 = arith.constant 0 : index
    %16 = vector.load %arg3[%c0_5, %c0_6] : memref<8x32xbf16, #tpu.memory_space<vmem>>, vector<8x32xbf16>
    tpu.vector_store %arg3[%c0_5, %c0_6], %15 {strides = array<i32>} : memref<8x32xbf16, #tpu.memory_space<vmem>>, vector<8x32xbf16>,
    return
  }
  func.func @transform_0(%arg0: i32) -> (i32, i32) {
    %c0_i32 = arith.constant 0 : i32
    %c0_i32_0 = arith.constant 0 : i32
    return %arg0, %c0_i32 : i32, i32
  }
  func.func @transform_1(%arg0: i32) -> (i32, i32) {
    %c0_i32 = arith.constant 0 : i32
    %c0_i32_0 = arith.constant 0 : i32
    %c0_i32_1 = arith.constant 0 : i32
    return %c0_i32, %c0_i32_0 : i32, i32
  }
  func.func @transform_2(%arg0: i32) -> (i32, i32) {
    %c0_i32 = arith.constant 0 : i32
    %c0_i32_0 = arith.constant 0 : i32
    return %arg0, %c0_i32 : i32, i32
  }
}

</mosaic_0001>

<llo_original>
// kernel: tpu_custom_call.1
$region0: #{tpu_custom_call.1}
  #allocation0 [shape = 'u32[]', space=smem, size = 0x4, offset = 0x4, fixed_abs, tag = 'smem constant byte address 0x4 - core index']
  #allocation1 [shape = 'u32[144,128]{1,0:T(1,128)}', space=vmem, size = 0x12000, scoped, tag = 'internal scratch']
  %s0 = inlined_call_operand.hbm [shape: bf16[16,32], index: 0, kind: input, shape index: {}]
  %s1 = inlined_call_operand.vmem [shape: bf16[1,32], index: 1, kind: input, shape index: {}]
  %s2 = inlined_call_operand.hbm [shape: bf16[16,32], index: 2, kind: output, shape index: {}]
  %s3 = sld [smem:[#allocation0]]
  $region45: #{tpu_custom_call.1} parent=0
    _
  %s5 = ssub.s32 1, %s3
  %s6 = scalar_select 0, %s5, %s3
  $region1: #{tpu_custom_call.1} parent=0
    #allocation2 [shape = 'u8[4096]{0}', space=vmem, size = 0x1000, scoped, tag = 'input window, operand 0']
    #allocation3 [shape = 's32[2]{0}', space=sflag, size = 0x8, scoped, tag = 'scoped memory for tpu_custom_call.1']
    #allocation4 [shape = 's32[2]{0}', space=sflag, size = 0x8, scoped, tag = 'scoped memory for tpu_custom_call.1']
    #allocation5 [shape = 'u8[4096]{0}', space=vmem, size = 0x1000, scoped, tag = 'output window, operand 0']
    %7 = vsyncpa [#allocation3], 0
    %s8 = scalar_lea.sflag [#allocation3], 1
    %9 = vsyncpa %s8, 0
    %10 = vsyncpa [#allocation4], 0
    %s11 = scalar_lea.sflag [#allocation4], 1
    %12 = vsyncpa %s11, 0
    loop: start=0, step=1, limit=4
    $region2: #{tpu_custom_call.1} parent=1 // loop_pre_header
      _
    $region3: #{tpu_custom_call.1} parent=1 // loop_header
      %s14 = sphi 0, %s18
      %p15 = scmp.ge.s32.totalorder %s14, 4
      %s24 = sphi 0, %s26
      %s27 = sphi 0, %s24
      %s28 = sphi 0, %s27
      %s44 = sphi 0, %s28
      %s48 = sphi 0, %s48
      %s50 = sphi 0, %s48
      %s51 = sphi 0, %s50
      %s65 = sphi 0, %s51
      %s71 = sphi 0, %s73
      %s74 = sphi 0, %s71
      %s75 = sphi 0, %s74
      %s91 = sphi 0, %s75
    $region4: #{tpu_custom_call.1} parent=1 // loop_header_branch
      %17 = sbr.rel (%p15) target = $region8
    $region5: #{tpu_custom_call.1} parent=1 // loop_body
      %s19 = ssub.s32 %s14, 1
      %s20 = ssub.s32 %s14, 2
      %s21 = sadd.s32 %s14, 1
      %s22 = ssub.s32 %s14, %s21
      %p23 = scmp.eq.s32.totalorder %s22, 0
      %s25 = sadd.s32 %s24, 1
      %s26 = scalar_select %p23, %s24, %s25
      %p29 = pneg %p23
      %p30 = scmp.eq.s32.totalorder %s14, 1
      %p31 = por %p29, %p30
      %p32 = scmp.ne.s32.totalorder %s24, %s27
      %p33 = scmp.eq.s32.totalorder %s14, 0
      %p34 = por %p32, %p33
      %p35 = scmp.ne.s32.totalorder %s24, %s27
      %p36 = scmp.eq.s32.totalorder %s19, 1
      %p37 = por %p35, %p36
      %p38 = scmp.ne.s32.totalorder %s27, %s28
      %p39 = scmp.eq.s32.totalorder %s19, 0
      %p40 = por %p38, %p39
      %p41 = scmp.ne.s32.totalorder %s27, %s28
      %p42 = scmp.eq.s32.totalorder %s20, 1
      %p43 = por %p41, %p42
      %p45 = scmp.ne.s32.totalorder %s28, %s44
      %p46 = scmp.eq.s32.totalorder %s20, 0
      %p47 = por %p45, %p46
      %s49 = sadd.s32 %s48, 1
      %p52 = scmp.eq.s32.totalorder %s14, 1
      %p53 = scmp.ne.s32.totalorder %s48, %s50
      %p54 = scmp.eq.s32.totalorder %s14, 0
      %p55 = por %p53, %p54
      %p56 = scmp.ne.s32.totalorder %s48, %s50
      %p57 = scmp.eq.s32.totalorder %s19, 1
      %p58 = por %p56, %p57
      %p59 = scmp.ne.s32.totalorder %s50, %s51
      %p60 = scmp.eq.s32.totalorder %s19, 0
      %p61 = por %p59, %p60
      %p62 = scmp.ne.s32.totalorder %s50, %s51
      %p63 = scmp.eq.s32.totalorder %s20, 1
      %p64 = por %p62, %p63
      %p66 = scmp.ne.s32.totalorder %s51, %s65
      %p67 = scmp.eq.s32.totalorder %s20, 0
      %p68 = por %p66, %p67
      %s69 = ssub.s32 %s14, %s21
      %p70 = scmp.eq.s32.totalorder %s69, 0
      %s72 = sadd.s32 %s71, 1
      %s73 = scalar_select %p70, %s71, %s72
      %p76 = pneg %p70
      %p77 = scmp.eq.s32.totalorder %s14, 1
      %p78 = por %p76, %p77
      %p79 = scmp.ne.s32.totalorder %s71, %s74
      %p80 = scmp.eq.s32.totalorder %s14, 0
      %p81 = por %p79, %p80
      %p82 = scmp.ne.s32.totalorder %s71, %s74
      %p83 = scmp.eq.s32.totalorder %s19, 1
      %p84 = por %p82, %p83
      %p85 = scmp.ne.s32.totalorder %s74, %s75
      %p86 = scmp.eq.s32.totalorder %s19, 0
      %p87 = por %p85, %p86
      %p88 = scmp.ne.s32.totalorder %s74, %s75
      %p89 = scmp.eq.s32.totalorder %s20, 1
      %p90 = por %p88, %p89
      %p92 = scmp.ne.s32.totalorder %s75, %s91
      %p93 = scmp.eq.s32.totalorder %s20, 0
      %p94 = por %p92, %p93
      %p95 = scmp.le.s32.totalorder 1, %s14
      %p96 = scmp.lt.s32.totalorder %s14, 3
      %p97 = pnand %p95, %p96
      %p98 = pneg %p97
      // Predicated region
      $region9: #{tpu_custom_call.1} parent=5 // pred_check
        _
      $region10: #{tpu_custom_call.1} parent=5 // pred_check_branch
        %100 = sbr.rel (%p97) target = $region12
      $region11: #{tpu_custom_call.1} parent=5 // pred_region
        %s101 = ssub.s32 %s14, 1
        // Predicated region
        $region13: #{tpu_custom_call.1} parent=11 // pred_check
          %p102 = pneg %p61
        $region14: #{tpu_custom_call.1} parent=11 // pred_check_branch
          %104 = sbr.rel (%p102) target = $region16
        $region15: #{tpu_custom_call.1} parent=11 // pred_region
          _
        $region16: #{tpu_custom_call.1} parent=11 // pred_fallthru
          _
      $region12: #{tpu_custom_call.1} parent=5 // pred_fallthru
        _
      %p105 = scmp.lt.s32.totalorder %s14, 2
      // Predicated region
      $region17: #{tpu_custom_call.1} parent=5 // pred_check
        %p106 = pneg %p105
      $region18: #{tpu_custom_call.1} parent=5 // pred_check_branch
        %108 = sbr.rel (%p106) target = $region20
      $region19: #{tpu_custom_call.1} parent=5 // pred_region
        // Predicated region
        $region21: #{tpu_custom_call.1} parent=19 // pred_check
          %p109 = pneg %p34
        $region22: #{tpu_custom_call.1} parent=19 // pred_check_branch
          %111 = sbr.rel (%p109) target = $region24
        $region23: #{tpu_custom_call.1} parent=19 // pred_region
          %s112 = sand.u32 %s24, 1
          %s113 = scalar_lea.sflag [#allocation3], %s112
          %s114 = sand.u32 %s24, 1
          %s115 = smul.addr %s114, 4
          %s116 = scalar_lea.vmem [#allocation2], %s115
          %s118 = ssub.s32 64, 64
          %119 = vsyncadd %s113, %s118
          %s120 = smul.addr %s14, 64
          %s121 = scalar_lea.hbm %s0, %s120
          %s123 = sshll.u32 %s116, 4
          %s124 = int_to_ptr.vmem [resolvable:$true] %s123
          %126 = dma.hbm_to_vmem [thread:$0]  %s121, 64, %s124, %s113
        $region24: #{tpu_custom_call.1} parent=19 // pred_fallthru
          _
      $region20: #{tpu_custom_call.1} parent=5 // pred_fallthru
        _
      %p127 = scmp.le.s32.totalorder 1, %s14
      %p128 = scmp.lt.s32.totalorder %s14, 3
      %p129 = pnand %p127, %p128
      %p130 = pneg %p129
      // Predicated region
      $region25: #{tpu_custom_call.1} parent=5 // pred_check
        _
      $region26: #{tpu_custom_call.1} parent=5 // pred_check_branch
        %132 = sbr.rel (%p129) target = $region28
      $region27: #{tpu_custom_call.1} parent=5 // pred_region
        %s133 = ssub.s32 %s14, 1
        %s134 = sand.u32 %s27, 1
        %s135 = scalar_lea.sflag [#allocation3], %s134
        %s136 = sand.u32 %s27, 1
        %s137 = smul.addr %s136, 4
        %s138 = scalar_lea.vmem [#allocation2], %s137
        // Predicated region
        $region29: #{tpu_custom_call.1} parent=27 // pred_check
          %p139 = pneg %p40
        $region30: #{tpu_custom_call.1} parent=27 // pred_check_branch
          %141 = sbr.rel (%p139) target = $region32
        $region31: #{tpu_custom_call.1} parent=27 // pred_region
          %142 = dma.done %s135, 64
        $region32: #{tpu_custom_call.1} parent=27 // pred_fallthru
          _
        %s143 = sand.u32 %s27, 1
        %s144 = scalar_lea.sflag [#allocation3], %s143
        %s145 = sand.u32 %s27, 1
        %s146 = smul.addr %s145, 4
        %s147 = scalar_lea.vmem [#allocation2], %s146
        %p148 = pneg %p40
        %p149 = pneg %p37
        %p150 = pneg %p61
        %p151 = pneg %p58
        %p152 = pneg %p87
        %p153 = pneg %p84
        %s154 = sand.u32 %s74, 1
        %s155 = scalar_lea.sflag [#allocation4], %s154
        %s156 = sand.u32 %s74, 1
        %s157 = smul.addr %s156, 4
        %s158 = scalar_lea.vmem [#allocation5], %s157
        %v159 = vld [vmem:[%s138] sm:$0xf]
        %v160 = vunpack.c.l.bf16 %v159
        %v161 = vmul.f32 %v160, %v160
        %vm162 = vcmask 261120
        %v163 = vsel %vm162, %v161, 0.0
        %164 = vadd.xlane.f32.xlu0 %v163
        %v165 = vpop.xlane.xlu0 %164
        %v166 = vrcp.pop 32.0
        %v167 = vmul.f32 %v165, %v166
        %v168 = vadd.f32 %v167, 1e-06
        %v169 = vrsqrt.pop %v168
        %v170 = vpack.c.bf16 %v169, %v169
        %v171 = vmul.bf16 %v159, %v170
        %v172 = vld [vmem:[%s1] sm:$0x1]
        %v174 = vpack.i.b16 %v172, %v172
        %v176 = vlaneseq
        %v177 = vshrl.u32 %v176, 7
        %v178 = vsub.s32 0, %v177
        %v179 = vrot.slane %v174, %v178
        %v180 = vmul.bf16 %v171, %v179
        %vm181 = vcmask 257024
        %182 = vst.msk [vmem:[%s158] sm:$0xf] %vm181, %v180
        %s183 = sand.u32 %s74, 1
        %s184 = scalar_lea.sflag [#allocation4], %s183
        %s185 = sand.u32 %s74, 1
        %s186 = smul.addr %s185, 4
        %s187 = scalar_lea.vmem [#allocation5], %s186
        // Predicated region
        $region33: #{tpu_custom_call.1} parent=27 // pred_check
          %p188 = pneg %p84
        $region34: #{tpu_custom_call.1} parent=27 // pred_check_branch
          %190 = sbr.rel (%p188) target = $region36
        $region35: #{tpu_custom_call.1} parent=27 // pred_region
          %s192 = ssub.s32 64, 64
          %193 = vsyncadd %s184, %s192
          %s194 = smul.addr %s19, 64
          %s195 = scalar_lea.hbm %s2, %s194
          %s197 = sshll.u32 %s187, 4
          %s198 = int_to_ptr.vmem [resolvable:$true] %s197
          %200 = dma.vmem_to_hbm [thread:$0]  %s198, 64, %s195, %s184
        $region36: #{tpu_custom_call.1} parent=27 // pred_fallthru
          _
      $region28: #{tpu_custom_call.1} parent=5 // pred_fallthru
        _
      %p201 = scmp.le.s32.totalorder 2, %s14
      // Predicated region
      $region37: #{tpu_custom_call.1} parent=5 // pred_check
        %p202 = pneg %p201
      $region38: #{tpu_custom_call.1} parent=5 // pred_check_branch
        %204 = sbr.rel (%p202) target = $region40
      $region39: #{tpu_custom_call.1} parent=5 // pred_region
        %s205 = ssub.s32 %s14, 2
        // Predicated region
        $region41: #{tpu_custom_call.1} parent=39 // pred_check
          %p206 = pneg %p90
        $region42: #{tpu_custom_call.1} parent=39 // pred_check_branch
          %208 = sbr.rel (%p206) target = $region44
        $region43: #{tpu_custom_call.1} parent=39 // pred_region
          %s209 = sand.u32 %s75, 1
          %s210 = scalar_lea.sflag [#allocation4], %s209
          %s211 = sand.u32 %s75, 1
          %s212 = smul.addr %s211, 4
          %s213 = scalar_lea.vmem [#allocation5], %s212
          %214 = dma.done %s210, 64
        $region44: #{tpu_custom_call.1} parent=39 // pred_fallthru
          _
      $region40: #{tpu_custom_call.1} parent=5 // pred_fallthru
        _
    $region6: #{tpu_custom_call.1} parent=1 // loop_footer
      %s18 = sadd.s32 1, %s14
    $region7: #{tpu_custom_call.1} parent=1 // loop_footer_branch
      %13 = sbr.rel target = $region3
    $region8: #{tpu_custom_call.1} parent=1 // loop_exit
      _
    %215 = vsyncpa [#allocation3], 1
    %s216 = scalar_lea.sflag [#allocation3], 1
    %217 = vsyncpa %s216, 1
    %218 = vsyncpa [#allocation4], 1
    %s219 = scalar_lea.sflag [#allocation4], 1
    %220 = vsyncpa %s219, 1

</llo_original>
